<compile_context>
chip_gen: v5e
topology: v5e:2x2
jax: 0.10.0
libtpu: 0.0.40
codegen_flags: <defaults>
</compile_context>

<pallas_src>
import jax
import jax.numpy as jnp
from jax.experimental import pallas as pl
from jax.experimental.pallas import tpu as pltpu

IN_FEATURES = 100
OUT_FEATURES = 10
SUBLANE = 8  # f32 sublane granularity for the batch tile


def _round_up(v, m):
    return ((v + m - 1) // m) * m


def linear_relu_kernel(x_ref, w_ref, b_ref, o_ref):
    # One small MXU matmul per batch tile + bias add + ReLU, all in VMEM.
    y = jnp.dot(x_ref[...], w_ref[...], preferred_element_type=jnp.float32)
    o_ref[...] = jnp.maximum(y + b_ref[...], 0.0).astype(o_ref.dtype)


def linear_relu(x, w, b, *, tb_max=8192, min_pallas_batch=512):
    """relu(x @ w + b).

    x: (B, 100) f32, w: (100, 10) f32 (pre-transposed), b: (1, 10) f32
    returns (B, 10) f32.
    """
    B, K = x.shape
    Kw, N = w.shape
    assert K == Kw and b.shape == (1, N)

    # Small-batch fallback: a standalone pallas_call cannot beat the fused XLA
    # op at tiny B; avoid a regression for the module's nominal batch size.
    if B < min_pallas_batch:
        return jnp.maximum(x @ w + b, 0.0)

    # Batch tile: multiple of 8 (f32 sublane), as large as tb_max, but capped
    # so the grid has at least 2 steps when possible (v7x has 2 TensorCores).
    TB = min(tb_max, _round_up(B, SUBLANE))
    if B > 2 * SUBLANE and pl.cdiv(B, TB) < 2:
        TB = _round_up(pl.cdiv(B, 2), SUBLANE)
    grid = (pl.cdiv(B, TB),)

    cost = pl.CostEstimate(
        flops=2 * B * K * N,
        transcendentals=0,
        bytes_accessed=4 * (B * K + K * N + N + B * N),
    )

    return pl.pallas_call(
        linear_relu_kernel,
        out_shape=jax.ShapeDtypeStruct((B, N), x.dtype),
        grid=grid,
        in_specs=[
            # x: streamed per batch tile; last dim == full array dim (100).
            pl.BlockSpec((TB, K), lambda i: (i, 0)),
            # weight: same block every step -> stays VMEM-resident.
            pl.BlockSpec((K, N), lambda i: (0, 0)),
            # bias: same block every step -> stays VMEM-resident.
            pl.BlockSpec((1, N), lambda i: (0, 0)),
        ],
        # Output written directly at its natural (B, 10) shape; tail block is
        # handled by Pallas' masked writes.
        out_specs=pl.BlockSpec((TB, N), lambda i: (i, 0)),
        compiler_params=pltpu.CompilerParams(
            dimension_semantics=("parallel",),
        ),
        cost_estimate=cost,
    )(x, w, b)


def init_linear_params(key, in_features=IN_FEATURES, out_features=OUT_FEATURES):
    # Deterministic init matching torch.nn.Linear's default:
    # U(-1/sqrt(in_features), 1/sqrt(in_features)) for weight and bias.
    kw, kb = jax.random.split(key)
    bound = 1.0 / jnp.sqrt(jnp.float32(in_features))
    # Weight stored already transposed to (in_features, out_features).
    w = jax.random.uniform(kw, (in_features, out_features), jnp.float32,
                           minval=-bound, maxval=bound)
    b = jax.random.uniform(kb, (1, out_features), jnp.float32,
                           minval=-bound, maxval=bound)
    return w, b


if __name__ == "__main__":
    key = jax.random.PRNGKey(0)
    kx1, kx2, kx3, kp = jax.random.split(key, 4)

    w, b = init_linear_params(kp)

    # Case 1: the module's nominal small batch -> exercises the XLA fallback.
    B1 = 8
    x1 = jax.random.normal(kx1, (B1, IN_FEATURES), dtype=jnp.float32)
    out1 = linear_relu(x1, w, b)
    jax.block_until_ready(out1)
    ref1 = jnp.maximum(x1 @ w + b, 0.0)
    assert out1.shape == (B1, OUT_FEATURES)
    assert jnp.allclose(out1, ref1, atol=1e-5, rtol=1e-5)

    # Case 2: non-multiple-of-8 batch with a tiny tile to exercise the
    # multi-step pipelined grid and the masked tail block (no padding/slicing).
    B2 = 37
    x2 = jax.random.normal(kx2, (B2, IN_FEATURES), dtype=jnp.float32)
    out2 = linear_relu(x2, w, b, tb_max=8, min_pallas_batch=0)
    jax.block_until_ready(out2)
    ref2 = jnp.maximum(x2 @ w + b, 0.0)
    assert out2.shape == (B2, OUT_FEATURES)
    assert jnp.allclose(out2, ref2, atol=1e-5, rtol=1e-5)

    # Case 3: medium batch through the default path -> tile gets split so the
    # grid has >= 2 steps (both v7x TensorCores get work).
    B3 = 640
    x3 = jax.random.normal(kx3, (B3, IN_FEATURES), dtype=jnp.float32)
    out3 = linear_relu(x3, w, b)
    jax.block_until_ready(out3)
    ref3 = jnp.maximum(x3 @ w + b, 0.0)
    assert out3.shape == (B3, OUT_FEATURES)
    assert jnp.allclose(out3, ref3, atol=1e-5, rtol=1e-5)

    print("KERNEL_OK")
</pallas_src>

<mosaic_0001>
module attributes {stable_mosaic.version = 11 : i64} {
  func.func @linear_relu_kernel(%arg0: i32, %arg1: memref<8x100xf32, #tpu.memory_space<vmem>>, %arg2: memref<100x10xf32, #tpu.memory_space<vmem>>, %arg3: memref<1x10xf32, #tpu.memory_space<vmem>>, %arg4: memref<8x10xf32, #tpu.memory_space<vmem>>) attributes {dimension_semantics = [#tpu.dimension_semantics<parallel>], iteration_bounds = array<i64: 5>, scalar_prefetch = 0 : i64, scratch_operands = 0 : i64, tpu.core_type = #tpu.core_type<tc>, window_params = [{transform_indices = @transform_0, window_bounds = array<i64: 8, 100>}, {pipeline_mode = #tpu.pipeline_mode<synchronous>, transform_indices = @transform_1, window_bounds = array<i64: 100, 10>}, {pipeline_mode = #tpu.pipeline_mode<synchronous>, transform_indices = @transform_2, window_bounds = array<i64: 1, 10>}, {transform_indices = @transform_3, window_bounds = array<i64: 8, 10>}]} {
    %c0 = arith.constant 0 : index
    %c0_0 = arith.constant 0 : index
    %0 = vector.load %arg1[%c0, %c0_0] : memref<8x100xf32, #tpu.memory_space<vmem>>, vector<8x100xf32>
    %c0_1 = arith.constant 0 : index
    %c0_2 = arith.constant 0 : index
    %1 = vector.load %arg2[%c0_1, %c0_2] : memref<100x10xf32, #tpu.memory_space<vmem>>, vector<100x10xf32>
    %cst = arith.constant dense<0.000000e+00> : vector<8x10xf32>
    %2 = tpu.matmul %0, %1, %cst {dimension_numbers = #tpu.dot_dimension_numbers<[1], [0], [0], [1], [0, 0, 1, 1], [], []>} : vector<8x100xf32>, vector<100x10xf32>, vector<8x10xf32> -> vector<8x10xf32>
    %c0_3 = arith.constant 0 : index
    %c0_4 = arith.constant 0 : index
    %3 = vector.load %arg3[%c0_3, %c0_4] : memref<1x10xf32, #tpu.memory_space<vmem>>, vector<1x10xf32>
    %4 = vector.broadcast %3 : vector<1x10xf32> to vector<8x10xf32>
    %5 = arith.addf %2, %4 : vector<8x10xf32>
    %cst_5 = arith.constant 0.000000e+00 : f32
    %6 = vector.broadcast %cst_5 : f32 to vector<8x10xf32>
    %7 = arith.maximumf %5, %6 : vector<8x10xf32>
    %c0_6 = arith.constant 0 : index
    %c0_7 = arith.constant 0 : index
    %8 = vector.load %arg4[%c0_6, %c0_7] : memref<8x10xf32, #tpu.memory_space<vmem>>, vector<8x10xf32>
    tpu.vector_store %arg4[%c0_6, %c0_7], %7 {strides = array<i32>} : memref<8x10xf32, #tpu.memory_space<vmem>>, vector<8x10xf32>,
    return
  }
  func.func @transform_0(%arg0: i32) -> (i32, i32) {
    %c0_i32 = arith.constant 0 : i32
    %c0_i32_0 = arith.constant 0 : i32
    return %arg0, %c0_i32 : i32, i32
  }
  func.func @transform_1(%arg0: i32) -> (i32, i32) {
    %c0_i32 = arith.constant 0 : i32
    %c0_i32_0 = arith.constant 0 : i32
    %c0_i32_1 = arith.constant 0 : i32
    return %c0_i32, %c0_i32_0 : i32, i32
  }
  func.func @transform_2(%arg0: i32) -> (i32, i32) {
    %c0_i32 = arith.constant 0 : i32
    %c0_i32_0 = arith.constant 0 : i32
    %c0_i32_1 = arith.constant 0 : i32
    return %c0_i32, %c0_i32_0 : i32, i32
  }
  func.func @transform_3(%arg0: i32) -> (i32, i32) {
    %c0_i32 = arith.constant 0 : i32
    %c0_i32_0 = arith.constant 0 : i32
    return %arg0, %c0_i32 : i32, i32
  }
}

</mosaic_0001>

<llo_original>
// kernel: tpu_custom_call.1
$region0: #{tpu_custom_call.1}
  #allocation0 [shape = 'u32[]', space=smem, size = 0x4, offset = 0x4, fixed_abs, tag = 'smem constant byte address 0x4 - core index']
  #allocation1 [shape = 'u32[72,128]{1,0:T(1,128)}', space=vmem, size = 0x9000, scoped, tag = 'internal scratch']
  %s0 = inlined_call_operand.vmem [shape: f32[37,100], index: 0, kind: input, shape index: {}]
  %s1 = inlined_call_operand.vmem [shape: f32[100,10], index: 1, kind: input, shape index: {}]
  %s2 = inlined_call_operand.vmem [shape: f32[1,10], index: 2, kind: input, shape index: {}]
  %s3 = inlined_call_operand.vmem [shape: f32[37,10], index: 3, kind: output, shape index: {}]
  %s4 = sld [smem:[#allocation0]]
  $region45: #{tpu_custom_call.1} parent=0
    _
  %s6 = ssub.s32 1, %s4
  %s7 = scalar_select 0, %s6, %s4
  loop: start=0, step=1, limit=7
  $region2: #{tpu_custom_call.1} parent=0 // loop_pre_header
    _
  $region3: #{tpu_custom_call.1} parent=0 // loop_header
    %s9 = sphi 0, %s13
    %p10 = scmp.ge.s32.totalorder %s9, 7
    %s19 = sphi 0, %s21
    %s22 = sphi 0, %s19
    %s23 = sphi 0, %s22
    %s39 = sphi 0, %s23
    %s43 = sphi 0, %s43
    %s45 = sphi 0, %s43
    %s46 = sphi 0, %s45
    %s60 = sphi 0, %s46
    %s64 = sphi 0, %s64
    %s66 = sphi 0, %s64
    %s67 = sphi 0, %s66
    %s81 = sphi 0, %s67
    %s87 = sphi 0, %s89
    %s90 = sphi 0, %s87
    %s91 = sphi 0, %s90
    %s107 = sphi 0, %s91
  $region4: #{tpu_custom_call.1} parent=0 // loop_header_branch
    %12 = sbr.rel (%p10) target = $region8
  $region5: #{tpu_custom_call.1} parent=0 // loop_body
    %s14 = ssub.s32 %s9, 1
    %s15 = ssub.s32 %s9, 2
    %s16 = sadd.s32 %s9, 1
    %s17 = ssub.s32 %s9, %s16
    %p18 = scmp.eq.s32.totalorder %s17, 0
    %s20 = sadd.s32 %s19, 1
    %s21 = scalar_select %p18, %s19, %s20
    %p24 = pneg %p18
    %p25 = scmp.eq.s32.totalorder %s9, 4
    %p26 = por %p24, %p25
    %p27 = scmp.ne.s32.totalorder %s19, %s22
    %p28 = scmp.eq.s32.totalorder %s9, 0
    %p29 = por %p27, %p28
    %p30 = scmp.ne.s32.totalorder %s19, %s22
    %p31 = scmp.eq.s32.totalorder %s14, 4
    %p32 = por %p30, %p31
    %p33 = scmp.ne.s32.totalorder %s22, %s23
    %p34 = scmp.eq.s32.totalorder %s14, 0
    %p35 = por %p33, %p34
    %p36 = scmp.ne.s32.totalorder %s22, %s23
    %p37 = scmp.eq.s32.totalorder %s15, 4
    %p38 = por %p36, %p37
    %p40 = scmp.ne.s32.totalorder %s23, %s39
    %p41 = scmp.eq.s32.totalorder %s15, 0
    %p42 = por %p40, %p41
    %s44 = sadd.s32 %s43, 1
    %p47 = scmp.eq.s32.totalorder %s9, 4
    %p48 = scmp.ne.s32.totalorder %s43, %s45
    %p49 = scmp.eq.s32.totalorder %s9, 0
    %p50 = por %p48, %p49
    %p51 = scmp.ne.s32.totalorder %s43, %s45
    %p52 = scmp.eq.s32.totalorder %s14, 4
    %p53 = por %p51, %p52
    %p54 = scmp.ne.s32.totalorder %s45, %s46
    %p55 = scmp.eq.s32.totalorder %s14, 0
    %p56 = por %p54, %p55
    %p57 = scmp.ne.s32.totalorder %s45, %s46
    %p58 = scmp.eq.s32.totalorder %s15, 4
    %p59 = por %p57, %p58
    %p61 = scmp.ne.s32.totalorder %s46, %s60
    %p62 = scmp.eq.s32.totalorder %s15, 0
    %p63 = por %p61, %p62
    %s65 = sadd.s32 %s64, 1
    %p68 = scmp.eq.s32.totalorder %s9, 4
    %p69 = scmp.ne.s32.totalorder %s64, %s66
    %p70 = scmp.eq.s32.totalorder %s9, 0
    %p71 = por %p69, %p70
    %p72 = scmp.ne.s32.totalorder %s64, %s66
    %p73 = scmp.eq.s32.totalorder %s14, 4
    %p74 = por %p72, %p73
    %p75 = scmp.ne.s32.totalorder %s66, %s67
    %p76 = scmp.eq.s32.totalorder %s14, 0
    %p77 = por %p75, %p76
    %p78 = scmp.ne.s32.totalorder %s66, %s67
    %p79 = scmp.eq.s32.totalorder %s15, 4
    %p80 = por %p78, %p79
    %p82 = scmp.ne.s32.totalorder %s67, %s81
    %p83 = scmp.eq.s32.totalorder %s15, 0
    %p84 = por %p82, %p83
    %s85 = ssub.s32 %s9, %s16
    %p86 = scmp.eq.s32.totalorder %s85, 0
    %s88 = sadd.s32 %s87, 1
    %s89 = scalar_select %p86, %s87, %s88
    %p92 = pneg %p86
    %p93 = scmp.eq.s32.totalorder %s9, 4
    %p94 = por %p92, %p93
    %p95 = scmp.ne.s32.totalorder %s87, %s90
    %p96 = scmp.eq.s32.totalorder %s9, 0
    %p97 = por %p95, %p96
    %p98 = scmp.ne.s32.totalorder %s87, %s90
    %p99 = scmp.eq.s32.totalorder %s14, 4
    %p100 = por %p98, %p99
    %p101 = scmp.ne.s32.totalorder %s90, %s91
    %p102 = scmp.eq.s32.totalorder %s14, 0
    %p103 = por %p101, %p102
    %p104 = scmp.ne.s32.totalorder %s90, %s91
    %p105 = scmp.eq.s32.totalorder %s15, 4
    %p106 = por %p104, %p105
    %p108 = scmp.ne.s32.totalorder %s91, %s107
    %p109 = scmp.eq.s32.totalorder %s15, 0
    %p110 = por %p108, %p109
    %p111 = scmp.le.s32.totalorder 1, %s9
    %p112 = scmp.lt.s32.totalorder %s9, 6
    %p113 = pnand %p111, %p112
    %p114 = pneg %p113
    // Predicated region
    $region9: #{tpu_custom_call.1} parent=5 // pred_check
      _
    $region10: #{tpu_custom_call.1} parent=5 // pred_check_branch
      %116 = sbr.rel (%p113) target = $region12
    $region11: #{tpu_custom_call.1} parent=5 // pred_region
      %s117 = ssub.s32 %s9, 1
      // Predicated region
      $region13: #{tpu_custom_call.1} parent=11 // pred_check
        %p118 = pneg %p56
      $region14: #{tpu_custom_call.1} parent=11 // pred_check_branch
        %120 = sbr.rel (%p118) target = $region16
      $region15: #{tpu_custom_call.1} parent=11 // pred_region
        _
      $region16: #{tpu_custom_call.1} parent=11 // pred_fallthru
        _
      // Predicated region
      $region17: #{tpu_custom_call.1} parent=11 // pred_check
        %p121 = pneg %p77
      $region18: #{tpu_custom_call.1} parent=11 // pred_check_branch
        %123 = sbr.rel (%p121) target = $region20
      $region19: #{tpu_custom_call.1} parent=11 // pred_region
        _
      $region20: #{tpu_custom_call.1} parent=11 // pred_fallthru
        _
    $region12: #{tpu_custom_call.1} parent=5 // pred_fallthru
      _
    %p124 = scmp.lt.s32.totalorder %s9, 5
    // Predicated region
    $region21: #{tpu_custom_call.1} parent=5 // pred_check
      %p125 = pneg %p124
    $region22: #{tpu_custom_call.1} parent=5 // pred_check_branch
      %127 = sbr.rel (%p125) target = $region24
    $region23: #{tpu_custom_call.1} parent=5 // pred_region
      // Predicated region
      $region25: #{tpu_custom_call.1} parent=23 // pred_check
        %p128 = pneg %p29
      $region26: #{tpu_custom_call.1} parent=23 // pred_check_branch
        %130 = sbr.rel (%p128) target = $region28
      $region27: #{tpu_custom_call.1} parent=23 // pred_region
        %p131 = scmp.lt.s32.totalorder %s9, 4
        %s132 = scalar_select %p131, %s9, 4
        %s133 = smul.addr %s132, 8
        %s134 = scalar_lea.vmem %s0, %s133
      $region28: #{tpu_custom_call.1} parent=23 // pred_fallthru
        _
    $region24: #{tpu_custom_call.1} parent=5 // pred_fallthru
      _
    %p135 = scmp.le.s32.totalorder 1, %s9
    %p136 = scmp.lt.s32.totalorder %s9, 6
    %p137 = pnand %p135, %p136
    %p138 = pneg %p137
    // Predicated region
    $region29: #{tpu_custom_call.1} parent=5 // pred_check
      _
    $region30: #{tpu_custom_call.1} parent=5 // pred_check_branch
      %140 = sbr.rel (%p137) target = $region32
    $region31: #{tpu_custom_call.1} parent=5 // pred_region
      %s141 = ssub.s32 %s9, 1
      %p142 = scmp.lt.s32.totalorder %s14, 4
      %s143 = scalar_select %p142, %s14, 4
      %s144 = smul.addr %s143, 8
      %s145 = scalar_lea.vmem %s0, %s144
      %p146 = pneg %p35
      %p147 = pneg %p32
      %p148 = pneg %p56
      %p149 = pneg %p53
      %p150 = pneg %p77
      %p151 = pneg %p74
      %p152 = pneg %p103
      %p153 = pneg %p100
      %p154 = scmp.lt.s32.totalorder %s14, 4
      %s155 = scalar_select %p154, %s14, 4
      %s156 = smul.addr %s155, 8
      %s157 = scalar_lea.vmem %s3, %s156
      %p158 = scmp.lt.s32.totalorder %s14, 4
      %s159 = scalar_select %p158, %s14, 4
      %s160 = smul.addr %s159, 8
      %s161 = scalar_lea.vmem %s0, %s160
      %p162 = scmp.lt.s32.totalorder %s14, 4
      %s163 = scalar_select %p162, %s14, 4
      %s164 = smul.addr %s163, 8
      %s165 = scalar_lea.vmem %s3, %s164
      %v166 = vld [vmem:[%s161] sm:$0xff]
      %v167 = vld [vmem:[%s1] sm:$0xff]
      %v168 = vld [vmem:[%s1 + $0x8] sm:$0xff]
      %v169 = vld [vmem:[%s1 + $0x10] sm:$0xff]
      %v170 = vld [vmem:[%s1 + $0x18] sm:$0xff]
      %v171 = vld [vmem:[%s1 + $0x20] sm:$0xff]
      %v172 = vld [vmem:[%s1 + $0x28] sm:$0xff]
      %v173 = vld [vmem:[%s1 + $0x30] sm:$0xff]
      %v174 = vld [vmem:[%s1 + $0x38] sm:$0xff]
      %v175 = vld [vmem:[%s1 + $0x40] sm:$0xff]
      %v176 = vld [vmem:[%s1 + $0x48] sm:$0xff]
      %v177 = vld [vmem:[%s1 + $0x50] sm:$0xff]
      %v178 = vld [vmem:[%s1 + $0x58] sm:$0xff]
      %v179 = vld [vmem:[%s1 + $0x60] sm:$0xf]
      %v180 = vld [vmem:[%s2] sm:$0x1]
      %v182 = vperm.slane %v180, 0
      %vm184 = vcmask 818176
      %v186 = vsel %vm184, %v166, 0
      %vm188 = vcmask 1043456
      %v190 = vsel %vm188, %v179, 0
      %192 = vmatpush.msra.mxu0 0.0
      %193 = vmatpush.msra.mxu0 0.0
      %194 = vmatpush.msra.mxu0 0.0
      %195 = vmatpush.msra.mxu0 %v190
      %196 = vmatpush.msra.mxu0 %v178
      %197 = vmatpush.msra.mxu0 %v177
      %198 = vmatpush.msra.mxu0 %v176
      %199 = vmatpush.msra.mxu0 %v175
      %200 = vmatpush.msra.mxu0 %v174
      %201 = vmatpush.msra.mxu0 %v173
      %202 = vmatpush.msra.mxu0 %v172
      %203 = vmatpush.msra.mxu0 %v171
      %204 = vmatpush.msra.mxu0 %v170
      %205 = vmatpush.msra.mxu0 %v169
      %206 = vmatpush.msra.mxu0 %v168
      %207 = vmatpush.msra.mxu0 %v167
      %208 = vmatmul.f32.gmra.mxu0 %v186
      %v209 = vpop.f32.mrf.mxu0
      %v210 = vadd.f32 %v182, %v209
      %211 = vdwg.mxu0
      %v212 = vmax.f32 %v210, 0.0
      %vm213 = vcmask 80896
      %214 = vst.msk [vmem:[%s165] sm:$0xff] %vm213, %v212
      %p215 = scmp.lt.s32.totalorder %s14, 4
      %s216 = scalar_select %p215, %s14, 4
      %s217 = smul.addr %s216, 8
      %s218 = scalar_lea.vmem %s3, %s217
      // Predicated region
      $region33: #{tpu_custom_call.1} parent=31 // pred_check
        %p219 = pneg %p100
      $region34: #{tpu_custom_call.1} parent=31 // pred_check_branch
        %221 = sbr.rel (%p219) target = $region36
      $region35: #{tpu_custom_call.1} parent=31 // pred_region
        _
      $region36: #{tpu_custom_call.1} parent=31 // pred_fallthru
        _
    $region32: #{tpu_custom_call.1} parent=5 // pred_fallthru
      _
    %p222 = scmp.le.s32.totalorder 2, %s9
    // Predicated region
    $region37: #{tpu_custom_call.1} parent=5 // pred_check
      %p223 = pneg %p222
    $region38: #{tpu_custom_call.1} parent=5 // pred_check_branch
      %225 = sbr.rel (%p223) target = $region40
    $region39: #{tpu_custom_call.1} parent=5 // pred_region
      %s226 = ssub.s32 %s9, 2
      // Predicated region
      $region41: #{tpu_custom_call.1} parent=39 // pred_check
        %p227 = pneg %p106
      $region42: #{tpu_custom_call.1} parent=39 // pred_check_branch
        %229 = sbr.rel (%p227) target = $region44
      $region43: #{tpu_custom_call.1} parent=39 // pred_region
        %p230 = scmp.lt.s32.totalorder %s15, 4
        %s231 = scalar_select %p230, %s15, 4
        %s232 = smul.addr %s231, 8
        %s233 = scalar_lea.vmem %s3, %s232
      $region44: #{tpu_custom_call.1} parent=39 // pred_fallthru
        _
    $region40: #{tpu_custom_call.1} parent=5 // pred_fallthru
      _
  $region6: #{tpu_custom_call.1} parent=0 // loop_footer
    %s13 = sadd.s32 1, %s9
  $region7: #{tpu_custom_call.1} parent=0 // loop_footer_branch
    %8 = sbr.rel target = $region3
  $region8: #{tpu_custom_call.1} parent=0 // loop_exit
    _

</llo_original>
